<compile_context>
chip_gen: v7x
topology: tpu7x:2x2x1
jax: 0.10.0
libtpu: 0.0.40
codegen_flags: <defaults>
</compile_context>

<pallas_src>
import math

import jax
import jax.numpy as jnp
from jax.experimental import pallas as pl
from jax.experimental.pallas import tpu as pltpu

_SQRT_2_OVER_PI = math.sqrt(2.0 / math.pi)


def _gelu_tanh(x):
    # tanh-approximate GELU: the transcendental goes to the EUP (its own VLIW
    # slot) and overlaps with the depthwise VALU work.
    return 0.5 * x * (1.0 + jnp.tanh(_SQRT_2_OVER_PI * (x + 0.044715 * (x * x * x))))


def make_mbconv_kernel(H, W, L):
    # L = lane length of one block = (images per block) * H * W.
    def kernel(x_ref, w1_ref, w3_ref, phid_ref, b3_ref, mask_ref, o_ref):
        # x_ref   : (1, Cin, L)   one batch-block per grid step, spatial on lanes
        # w1_ref  : (Chid, Cin)   fused conv1 weight (1x1 conv + BN)
        # w3_ref  : (Cout, Chid)  fused conv3 weight (1x1 conv + BN)
        # phid_ref: (Chid, 16)    cols 0..8 = depthwise 3x3 taps (BN fused),
        #                         col 9 = conv1 bias, col 10 = conv2 bias
        # b3_ref  : (Cout, 1)     fused conv3 bias
        # mask_ref: (4, L)        f32 edge masks: not_top/not_bot/not_left/not_right
        # o_ref   : (1, Cout, L)
        x = x_ref[0]                                           # (Cin, L)
        phid = phid_ref[...]
        dw = phid[:, 0:9]                                      # (Chid, 9)
        b1 = phid[:, 9:10]                                     # (Chid, 1)
        b2 = phid[:, 10:11]                                    # (Chid, 1)

        # ---- conv1: 1x1 conv + fused BN + GELU (MXU) --------------------------
        h = jnp.dot(w1_ref[...], x, preferred_element_type=jnp.float32)
        h = _gelu_tanh(h + b1)                                 # (Chid, L)

        # ---- conv2: depthwise 3x3, stride 1, pad 1 + fused BN + GELU ----------
        # Registers only; zero padding reproduced by precomputed (1, L) masks.
        masks = mask_ref[...]
        not_top, not_bot = masks[0:1], masks[1:2]              # (1, L)
        not_left, not_right = masks[2:3], masks[3:4]           # (1, L)

        partials = []
        for oy in (-1, 0, 1):
            # v[p] = h[p + oy*W]  (wrap-around lanes get masked below)
            v = h if oy == 0 else pltpu.roll(h, (-oy * W) % L, axis=1)
            base = (oy + 1) * 3
            left = pltpu.roll(v, 1, axis=1)                    # left[p]  = v[p-1]  (ox=-1)
            right = pltpu.roll(v, L - 1, axis=1)               # right[p] = v[p+1]  (ox=+1)
            part = v * dw[:, base + 1:base + 2]
            part = part + (left * dw[:, base:base + 1]) * not_left
            part = part + (right * dw[:, base + 2:base + 3]) * not_right
            if oy == -1:
                part = part * not_top
            elif oy == 1:
                part = part * not_bot
            partials.append(part)
        acc = (partials[0] + partials[2]) + partials[1]        # short dependency chains
        h2 = _gelu_tanh(acc + b2)                              # (Chid, L)

        # ---- conv3: 1x1 conv + fused BN, residual add, GELU -------------------
        y = jnp.dot(w3_ref[...], h2, preferred_element_type=jnp.float32)
        y = y + b3_ref[...] + x                                # shortcut (Cout == Cin)
        o_ref[0] = _gelu_tanh(y)                               # lane-dense store

    return kernel


def mbconv_forward(x_nchw, params, *, batch_tile=1):
    """x_nchw: (B, C, H, W) float32 -> (B, C, H, W).

    batch_tile: images folded into one grid step along the lane axis.
      v7x/v6e: keep batch_tile=1 (grid=(B,), "parallel" keeps both v7x cores busy).
      v5e    : batch_tile=B folds the batch into one step (wider matmul N,
               no per-step overhead on the single TensorCore).
    """
    w1, phid, w3, b3 = params
    B, C, H, W = x_nchw.shape
    Chid = w1.shape[0]
    Cout = w3.shape[0]
    assert Cout == C, "MBConv residual requires out_chans == in_chans"
    assert B % batch_tile == 0
    Bt = batch_tile
    Bg = B // Bt
    HW = H * W
    L = Bt * HW

    if Bt == 1:
        xk = x_nchw.reshape(B, C, HW)
    else:
        # layout plumbing only: concatenate Bt images along the lane axis
        xk = x_nchw.reshape(Bg, Bt, C, HW).transpose(0, 2, 1, 3).reshape(Bg, C, L)

    # Precomputed zero-padding edge masks (period HW along the lanes).
    lane = jnp.arange(HW, dtype=jnp.int32)
    row = lane // W
    col = lane - row * W
    mask_img = jnp.stack(
        [row >= 1, row < H - 1, col >= 1, col < W - 1]).astype(jnp.float32)  # (4, HW)
    masks = jnp.tile(mask_img, (1, Bt))                                       # (4, L)

    def full_spec(a):
        nd = a.ndim
        return pl.BlockSpec(a.shape, lambda b, _nd=nd: (0,) * _nd)

    flops = B * HW * (2 * Chid * C + 2 * Cout * Chid + 2 * 9 * Chid)
    transcendentals = B * HW * (2 * Chid + Cout)
    bytes_accessed = 4 * (2 * x_nchw.size + w1.size + phid.size + w3.size
                          + b3.size + masks.size)

    out = pl.pallas_call(
        make_mbconv_kernel(H, W, L),
        out_shape=jax.ShapeDtypeStruct((Bg, Cout, L), jnp.float32),
        grid_spec=pl.GridSpec(
            grid=(Bg,),
            in_specs=[
                pl.BlockSpec((1, C, L), lambda b: (b, 0, 0)),
                full_spec(w1), full_spec(w3), full_spec(phid),
                full_spec(b3), full_spec(masks),
            ],
            out_specs=pl.BlockSpec((1, Cout, L), lambda b: (b, 0, 0)),
        ),
        compiler_params=pltpu.CompilerParams(
            dimension_semantics=("parallel",)),
        cost_estimate=pl.CostEstimate(
            flops=flops, transcendentals=transcendentals,
            bytes_accessed=bytes_accessed),
    )(xk, w1, w3, phid, b3, masks)

    if Bt == 1:
        return out.reshape(B, Cout, H, W)
    return out.reshape(Bg, Cout, Bt, HW).transpose(0, 2, 1, 3).reshape(B, Cout, H, W)


def init_params(key, in_chans, out_chans, expand_ratio):
    """Deterministic params, shapes per MBConv.__init__, BN fused into convs."""
    hidden = int(in_chans * expand_ratio)
    eps = 1e-5
    k = jax.random.split(key, 12)

    def bn(kg, kb, km, kv, c):
        gamma = 1.0 + 0.1 * jax.random.normal(kg, (c,), jnp.float32)
        beta = 0.1 * jax.random.normal(kb, (c,), jnp.float32)
        mean = 0.1 * jax.random.normal(km, (c,), jnp.float32)
        var = 1.0 + 0.1 * jax.random.uniform(kv, (c,), jnp.float32)
        scale = gamma / jnp.sqrt(var + eps)
        bias = beta - mean * scale
        return scale, bias

    # conv1: (hidden, in, 1, 1) -> fused (hidden, in)
    w1_t = 0.1 * jax.random.normal(k[0], (hidden, in_chans), jnp.float32)
    s1, b1 = bn(k[1], k[2], k[3], k[4], hidden)
    w1 = w1_t * s1[:, None]

    # conv2 (depthwise): (hidden, 1, 3, 3) -> fused (hidden, 9)
    dw_t = 0.1 * jax.random.normal(k[5], (hidden, 3, 3), jnp.float32)
    s2, b2 = bn(k[6], k[7], k[8], k[9], hidden)
    dw = (dw_t * s2[:, None, None]).reshape(hidden, 9)

    # conv3: (out, hidden, 1, 1) -> fused (out, hidden)
    # (bn_weight_init=0 in the reference; randomized here to keep the test non-trivial)
    w3_t = 0.1 * jax.random.normal(k[10], (out_chans, hidden), jnp.float32)
    s3, b3 = bn(*jax.random.split(k[11], 4), out_chans)
    w3 = w3_t * s3[:, None]
    b3 = b3.reshape(out_chans, 1)

    # Pack all per-hidden-channel smalls into one resident (hidden, 16) slab.
    phid = jnp.zeros((hidden, 16), jnp.float32)
    phid = phid.at[:, 0:9].set(dw)
    phid = phid.at[:, 9].set(b1)
    phid = phid.at[:, 10].set(b2)

    return (w1, phid, w3, b3)


def reference_forward(x, params):
    """Plain-JAX NCHW reference (same fused math + tanh GELU) for checking."""
    w1, phid, w3, b3 = params
    dw = phid[:, 0:9]
    b1 = phid[:, 9]
    b2 = phid[:, 10]
    B, C, H, W = x.shape
    hi = jnp.einsum("kc,bchw->bkhw", w1, x, precision=jax.lax.Precision.HIGHEST)
    h = _gelu_tanh(hi + b1.reshape(1, -1, 1, 1))
    hp = jnp.pad(h, ((0, 0), (0, 0), (1, 1), (1, 1)))
    k3 = dw.reshape(-1, 3, 3)
    acc = jnp.zeros_like(h)
    for dy in range(3):
        for dx in range(3):
            acc = acc + hp[:, :, dy:dy + H, dx:dx + W] * k3[:, dy, dx].reshape(1, -1, 1, 1)
    h2 = _gelu_tanh(acc + b2.reshape(1, -1, 1, 1))
    y = jnp.einsum("kc,bchw->bkhw", w3, h2, precision=jax.lax.Precision.HIGHEST)
    y = y + b3.reshape(1, -1, 1, 1) + x
    return _gelu_tanh(y)


if __name__ == "__main__":
    key = jax.random.PRNGKey(0)
    B, C, H, W = 2, 8, 16, 16       # in_chans == out_chans (required by residual)
    expand_ratio = 4.0
    kx, kp = jax.random.split(key)
    x = jax.random.normal(kx, (B, C, H, W), jnp.float32)
    params = init_params(kp, C, C, expand_ratio)

    out = mbconv_forward(x, params)          # batch_tile=1; pass batch_tile=B on v5e
    jax.block_until_ready(out)

    ref = reference_forward(x, params)
    assert out.shape == (B, C, H, W)
    err = float(jnp.max(jnp.abs(out - ref)))
    assert jnp.allclose(out, ref, atol=1e-4, rtol=1e-4), err
    print("KERNEL_OK")
</pallas_src>

<mosaic_0001>
module attributes {stable_mosaic.version = 11 : i64} {
  func.func @kernel(%arg0: i32, %arg1: memref<1x8x256xf32, #tpu.memory_space<vmem>>, %arg2: memref<32x8xf32, #tpu.memory_space<vmem>>, %arg3: memref<8x32xf32, #tpu.memory_space<vmem>>, %arg4: memref<32x16xf32, #tpu.memory_space<vmem>>, %arg5: memref<8x1xf32, #tpu.memory_space<vmem>>, %arg6: memref<4x256xf32, #tpu.memory_space<vmem>>, %arg7: memref<1x8x256xf32, #tpu.memory_space<vmem>>) attributes {dimension_semantics = [#tpu.dimension_semantics<parallel>], iteration_bounds = array<i64: 2>, scalar_prefetch = 0 : i64, scratch_operands = 0 : i64, tpu.core_type = #tpu.core_type<tc>, window_params = [{transform_indices = @transform_0, window_bounds = array<i64: 1, 8, 256>}, {pipeline_mode = #tpu.pipeline_mode<synchronous>, transform_indices = @transform_1, window_bounds = array<i64: 32, 8>}, {pipeline_mode = #tpu.pipeline_mode<synchronous>, transform_indices = @transform_2, window_bounds = array<i64: 8, 32>}, {pipeline_mode = #tpu.pipeline_mode<synchronous>, transform_indices = @transform_3, window_bounds = array<i64: 32, 16>}, {pipeline_mode = #tpu.pipeline_mode<synchronous>, transform_indices = @transform_4, window_bounds = array<i64: 8, 1>}, {pipeline_mode = #tpu.pipeline_mode<synchronous>, transform_indices = @transform_5, window_bounds = array<i64: 4, 256>}, {transform_indices = @transform_6, window_bounds = array<i64: 1, 8, 256>}]} {
    %c0 = arith.constant 0 : index
    %c0_0 = arith.constant 0 : index
    %c0_1 = arith.constant 0 : index
    %0 = vector.load %arg1[%c0, %c0_0, %c0_1] : memref<1x8x256xf32, #tpu.memory_space<vmem>>, vector<1x8x256xf32>
    %1 = vector.shape_cast %0 : vector<1x8x256xf32> to vector<8x256xf32>
    %c0_2 = arith.constant 0 : index
    %c0_3 = arith.constant 0 : index
    %2 = vector.load %arg4[%c0_2, %c0_3] : memref<32x16xf32, #tpu.memory_space<vmem>>, vector<32x16xf32>
    %3 = vector.extract_strided_slice %2 {offsets = [0, 0], sizes = [32, 9], strides = [1, 1]} : vector<32x16xf32> to vector<32x9xf32>
    %4 = vector.extract_strided_slice %2 {offsets = [0, 9], sizes = [32, 1], strides = [1, 1]} : vector<32x16xf32> to vector<32x1xf32>
    %5 = vector.extract_strided_slice %2 {offsets = [0, 10], sizes = [32, 1], strides = [1, 1]} : vector<32x16xf32> to vector<32x1xf32>
    %c0_4 = arith.constant 0 : index
    %c0_5 = arith.constant 0 : index
    %6 = vector.load %arg2[%c0_4, %c0_5] : memref<32x8xf32, #tpu.memory_space<vmem>>, vector<32x8xf32>
    %cst = arith.constant dense<0.000000e+00> : vector<32x256xf32>
    %7 = tpu.matmul %6, %1, %cst {dimension_numbers = #tpu.dot_dimension_numbers<[1], [0], [0], [1], [0, 0, 1, 1], [], []>} : vector<32x8xf32>, vector<8x256xf32>, vector<32x256xf32> -> vector<32x256xf32>
    %8 = vector.broadcast %4 : vector<32x1xf32> to vector<32x256xf32>
    %9 = arith.addf %7, %8 : vector<32x256xf32>
    %cst_6 = arith.constant 5.000000e-01 : f32
    %10 = vector.broadcast %cst_6 : f32 to vector<32x256xf32>
    %11 = arith.mulf %10, %9 : vector<32x256xf32>
    %12 = arith.mulf %9, %9 : vector<32x256xf32>
    %13 = arith.mulf %12, %9 : vector<32x256xf32>
    %cst_7 = arith.constant 4.471500e-02 : f32
    %14 = vector.broadcast %cst_7 : f32 to vector<32x256xf32>
    %15 = arith.mulf %14, %13 : vector<32x256xf32>
    %16 = arith.addf %9, %15 : vector<32x256xf32>
    %cst_8 = arith.constant 0.797884583 : f32
    %17 = vector.broadcast %cst_8 : f32 to vector<32x256xf32>
    %18 = arith.mulf %17, %16 : vector<32x256xf32>
    %19 = math.tanh %18 : vector<32x256xf32>
    %cst_9 = arith.constant 1.000000e+00 : f32
    %20 = vector.broadcast %cst_9 : f32 to vector<32x256xf32>
    %21 = arith.addf %20, %19 : vector<32x256xf32>
    %22 = arith.mulf %11, %21 : vector<32x256xf32>
    %c0_10 = arith.constant 0 : index
    %c0_11 = arith.constant 0 : index
    %23 = vector.load %arg6[%c0_10, %c0_11] : memref<4x256xf32, #tpu.memory_space<vmem>>, vector<4x256xf32>
    %24 = vector.extract_strided_slice %23 {offsets = [0, 0], sizes = [1, 256], strides = [1, 1]} : vector<4x256xf32> to vector<1x256xf32>
    %25 = vector.extract_strided_slice %23 {offsets = [1, 0], sizes = [1, 256], strides = [1, 1]} : vector<4x256xf32> to vector<1x256xf32>
    %26 = vector.extract_strided_slice %23 {offsets = [2, 0], sizes = [1, 256], strides = [1, 1]} : vector<4x256xf32> to vector<1x256xf32>
    %27 = vector.extract_strided_slice %23 {offsets = [3, 0], sizes = [1, 256], strides = [1, 1]} : vector<4x256xf32> to vector<1x256xf32>
    %c16_i32 = arith.constant 16 : i32
    %28 = tpu.dynamic_rotate %22 by %c16_i32 dim 1 : vector<32x256xf32>, i32 -> vector<32x256xf32>
    %c1_i32 = arith.constant 1 : i32
    %29 = tpu.dynamic_rotate %28 by %c1_i32 dim 1 : vector<32x256xf32>, i32 -> vector<32x256xf32>
    %c255_i32 = arith.constant 255 : i32
    %30 = tpu.dynamic_rotate %28 by %c255_i32 dim 1 : vector<32x256xf32>, i32 -> vector<32x256xf32>
    %31 = vector.extract_strided_slice %3 {offsets = [0, 1], sizes = [32, 1], strides = [1, 1]} : vector<32x9xf32> to vector<32x1xf32>
    %32 = vector.broadcast %31 : vector<32x1xf32> to vector<32x256xf32>
    %33 = arith.mulf %28, %32 : vector<32x256xf32>
    %34 = vector.extract_strided_slice %3 {offsets = [0, 0], sizes = [32, 1], strides = [1, 1]} : vector<32x9xf32> to vector<32x1xf32>
    %35 = vector.broadcast %34 : vector<32x1xf32> to vector<32x256xf32>
    %36 = arith.mulf %29, %35 : vector<32x256xf32>
    %37 = vector.broadcast %26 : vector<1x256xf32> to vector<32x256xf32>
    %38 = arith.mulf %36, %37 : vector<32x256xf32>
    %39 = arith.addf %33, %38 : vector<32x256xf32>
    %40 = vector.extract_strided_slice %3 {offsets = [0, 2], sizes = [32, 1], strides = [1, 1]} : vector<32x9xf32> to vector<32x1xf32>
    %41 = vector.broadcast %40 : vector<32x1xf32> to vector<32x256xf32>
    %42 = arith.mulf %30, %41 : vector<32x256xf32>
    %43 = vector.broadcast %27 : vector<1x256xf32> to vector<32x256xf32>
    %44 = arith.mulf %42, %43 : vector<32x256xf32>
    %45 = arith.addf %39, %44 : vector<32x256xf32>
    %46 = vector.broadcast %24 : vector<1x256xf32> to vector<32x256xf32>
    %47 = arith.mulf %45, %46 : vector<32x256xf32>
    %c1_i32_12 = arith.constant 1 : i32
    %48 = tpu.dynamic_rotate %22 by %c1_i32_12 dim 1 : vector<32x256xf32>, i32 -> vector<32x256xf32>
    %c255_i32_13 = arith.constant 255 : i32
    %49 = tpu.dynamic_rotate %22 by %c255_i32_13 dim 1 : vector<32x256xf32>, i32 -> vector<32x256xf32>
    %50 = vector.extract_strided_slice %3 {offsets = [0, 4], sizes = [32, 1], strides = [1, 1]} : vector<32x9xf32> to vector<32x1xf32>
    %51 = vector.broadcast %50 : vector<32x1xf32> to vector<32x256xf32>
    %52 = arith.mulf %22, %51 : vector<32x256xf32>
    %53 = vector.extract_strided_slice %3 {offsets = [0, 3], sizes = [32, 1], strides = [1, 1]} : vector<32x9xf32> to vector<32x1xf32>
    %54 = vector.broadcast %53 : vector<32x1xf32> to vector<32x256xf32>
    %55 = arith.mulf %48, %54 : vector<32x256xf32>
    %56 = vector.broadcast %26 : vector<1x256xf32> to vector<32x256xf32>
    %57 = arith.mulf %55, %56 : vector<32x256xf32>
    %58 = arith.addf %52, %57 : vector<32x256xf32>
    %59 = vector.extract_strided_slice %3 {offsets = [0, 5], sizes = [32, 1], strides = [1, 1]} : vector<32x9xf32> to vector<32x1xf32>
    %60 = vector.broadcast %59 : vector<32x1xf32> to vector<32x256xf32>
    %61 = arith.mulf %49, %60 : vector<32x256xf32>
    %62 = vector.broadcast %27 : vector<1x256xf32> to vector<32x256xf32>
    %63 = arith.mulf %61, %62 : vector<32x256xf32>
    %64 = arith.addf %58, %63 : vector<32x256xf32>
    %c240_i32 = arith.constant 240 : i32
    %65 = tpu.dynamic_rotate %22 by %c240_i32 dim 1 : vector<32x256xf32>, i32 -> vector<32x256xf32>
    %c1_i32_14 = arith.constant 1 : i32
    %66 = tpu.dynamic_rotate %65 by %c1_i32_14 dim 1 : vector<32x256xf32>, i32 -> vector<32x256xf32>
    %c255_i32_15 = arith.constant 255 : i32
    %67 = tpu.dynamic_rotate %65 by %c255_i32_15 dim 1 : vector<32x256xf32>, i32 -> vector<32x256xf32>
    %68 = vector.extract_strided_slice %3 {offsets = [0, 7], sizes = [32, 1], strides = [1, 1]} : vector<32x9xf32> to vector<32x1xf32>
    %69 = vector.broadcast %68 : vector<32x1xf32> to vector<32x256xf32>
    %70 = arith.mulf %65, %69 : vector<32x256xf32>
    %71 = vector.extract_strided_slice %3 {offsets = [0, 6], sizes = [32, 1], strides = [1, 1]} : vector<32x9xf32> to vector<32x1xf32>
    %72 = vector.broadcast %71 : vector<32x1xf32> to vector<32x256xf32>
    %73 = arith.mulf %66, %72 : vector<32x256xf32>
    %74 = vector.broadcast %26 : vector<1x256xf32> to vector<32x256xf32>
    %75 = arith.mulf %73, %74 : vector<32x256xf32>
    %76 = arith.addf %70, %75 : vector<32x256xf32>
    %77 = vector.extract_strided_slice %3 {offsets = [0, 8], sizes = [32, 1], strides = [1, 1]} : vector<32x9xf32> to vector<32x1xf32>
    %78 = vector.broadcast %77 : vector<32x1xf32> to vector<32x256xf32>
    %79 = arith.mulf %67, %78 : vector<32x256xf32>
    %80 = vector.broadcast %27 : vector<1x256xf32> to vector<32x256xf32>
    %81 = arith.mulf %79, %80 : vector<32x256xf32>
    %82 = arith.addf %76, %81 : vector<32x256xf32>
    %83 = vector.broadcast %25 : vector<1x256xf32> to vector<32x256xf32>
    %84 = arith.mulf %82, %83 : vector<32x256xf32>
    %85 = arith.addf %47, %84 : vector<32x256xf32>
    %86 = arith.addf %85, %64 : vector<32x256xf32>
    %87 = vector.broadcast %5 : vector<32x1xf32> to vector<32x256xf32>
    %88 = arith.addf %86, %87 : vector<32x256xf32>
    %cst_16 = arith.constant 5.000000e-01 : f32
    %89 = vector.broadcast %cst_16 : f32 to vector<32x256xf32>
    %90 = arith.mulf %89, %88 : vector<32x256xf32>
    %91 = arith.mulf %88, %88 : vector<32x256xf32>
    %92 = arith.mulf %91, %88 : vector<32x256xf32>
    %cst_17 = arith.constant 4.471500e-02 : f32
    %93 = vector.broadcast %cst_17 : f32 to vector<32x256xf32>
    %94 = arith.mulf %93, %92 : vector<32x256xf32>
    %95 = arith.addf %88, %94 : vector<32x256xf32>
    %cst_18 = arith.constant 0.797884583 : f32
    %96 = vector.broadcast %cst_18 : f32 to vector<32x256xf32>
    %97 = arith.mulf %96, %95 : vector<32x256xf32>
    %98 = math.tanh %97 : vector<32x256xf32>
    %cst_19 = arith.constant 1.000000e+00 : f32
    %99 = vector.broadcast %cst_19 : f32 to vector<32x256xf32>
    %100 = arith.addf %99, %98 : vector<32x256xf32>
    %101 = arith.mulf %90, %100 : vector<32x256xf32>
    %c0_20 = arith.constant 0 : index
    %c0_21 = arith.constant 0 : index
    %102 = vector.load %arg3[%c0_20, %c0_21] : memref<8x32xf32, #tpu.memory_space<vmem>>, vector<8x32xf32>
    %cst_22 = arith.constant dense<0.000000e+00> : vector<8x256xf32>
    %103 = tpu.matmul %102, %101, %cst_22 {dimension_numbers = #tpu.dot_dimension_numbers<[1], [0], [0], [1], [0, 0, 1, 1], [], []>} : vector<8x32xf32>, vector<32x256xf32>, vector<8x256xf32> -> vector<8x256xf32>
    %c0_23 = arith.constant 0 : index
    %c0_24 = arith.constant 0 : index
    %104 = vector.load %arg5[%c0_23, %c0_24] : memref<8x1xf32, #tpu.memory_space<vmem>>, vector<8x1xf32>
    %105 = vector.broadcast %104 : vector<8x1xf32> to vector<8x256xf32>
    %106 = arith.addf %103, %105 : vector<8x256xf32>
    %107 = arith.addf %106, %1 : vector<8x256xf32>
    %cst_25 = arith.constant 5.000000e-01 : f32
    %108 = vector.broadcast %cst_25 : f32 to vector<8x256xf32>
    %109 = arith.mulf %108, %107 : vector<8x256xf32>
    %110 = arith.mulf %107, %107 : vector<8x256xf32>
    %111 = arith.mulf %110, %107 : vector<8x256xf32>
    %cst_26 = arith.constant 4.471500e-02 : f32
    %112 = vector.broadcast %cst_26 : f32 to vector<8x256xf32>
    %113 = arith.mulf %112, %111 : vector<8x256xf32>
    %114 = arith.addf %107, %113 : vector<8x256xf32>
    %cst_27 = arith.constant 0.797884583 : f32
    %115 = vector.broadcast %cst_27 : f32 to vector<8x256xf32>
    %116 = arith.mulf %115, %114 : vector<8x256xf32>
    %117 = math.tanh %116 : vector<8x256xf32>
    %cst_28 = arith.constant 1.000000e+00 : f32
    %118 = vector.broadcast %cst_28 : f32 to vector<8x256xf32>
    %119 = arith.addf %118, %117 : vector<8x256xf32>
    %120 = arith.mulf %109, %119 : vector<8x256xf32>
    %c0_29 = arith.constant 0 : index
    %c0_30 = arith.constant 0 : index
    %c0_31 = arith.constant 0 : index
    %121 = vector.load %arg7[%c0_29, %c0_30, %c0_31] : memref<1x8x256xf32, #tpu.memory_space<vmem>>, vector<1x8x256xf32>
    %122 = vector.shape_cast %121 : vector<1x8x256xf32> to vector<8x256xf32>
    %123 = vector.shape_cast %120 : vector<8x256xf32> to vector<1x8x256xf32>
    tpu.vector_store %arg7[%c0_29, %c0_30, %c0_31], %123 {strides = array<i32>} : memref<1x8x256xf32, #tpu.memory_space<vmem>>, vector<1x8x256xf32>,
    return
  }
  func.func @transform_0(%arg0: i32) -> (i32, i32, i32) {
    %c0_i32 = arith.constant 0 : i32
    %c0_i32_0 = arith.constant 0 : i32
    %c0_i32_1 = arith.constant 0 : i32
    return %arg0, %c0_i32, %c0_i32_0 : i32, i32, i32
  }
  func.func @transform_1(%arg0: i32) -> (i32, i32) {
    %c0_i32 = arith.constant 0 : i32
    %c0_i32_0 = arith.constant 0 : i32
    %c0_i32_1 = arith.constant 0 : i32
    return %c0_i32, %c0_i32_0 : i32, i32
  }
  func.func @transform_2(%arg0: i32) -> (i32, i32) {
    %c0_i32 = arith.constant 0 : i32
    %c0_i32_0 = arith.constant 0 : i32
    %c0_i32_1 = arith.constant 0 : i32
    return %c0_i32, %c0_i32_0 : i32, i32
  }
  func.func @transform_3(%arg0: i32) -> (i32, i32) {
    %c0_i32 = arith.constant 0 : i32
    %c0_i32_0 = arith.constant 0 : i32
    %c0_i32_1 = arith.constant 0 : i32
    return %c0_i32, %c0_i32_0 : i32, i32
  }
  func.func @transform_4(%arg0: i32) -> (i32, i32) {
    %c0_i32 = arith.constant 0 : i32
    %c0_i32_0 = arith.constant 0 : i32
    %c0_i32_1 = arith.constant 0 : i32
    return %c0_i32, %c0_i32_0 : i32, i32
  }
  func.func @transform_5(%arg0: i32) -> (i32, i32) {
    %c0_i32 = arith.constant 0 : i32
    %c0_i32_0 = arith.constant 0 : i32
    %c0_i32_1 = arith.constant 0 : i32
    return %c0_i32, %c0_i32_0 : i32, i32
  }
  func.func @transform_6(%arg0: i32) -> (i32, i32, i32) {
    %c0_i32 = arith.constant 0 : i32
    %c0_i32_0 = arith.constant 0 : i32
    %c0_i32_1 = arith.constant 0 : i32
    return %arg0, %c0_i32, %c0_i32_0 : i32, i32, i32
  }
}

</mosaic_0001>

<llo_original>
// kernel: tpu_custom_call.1
$region0: #{tpu_custom_call.1}
  #allocation0 [shape = 'u32[]', space=smem, size = 0x4, offset = 0x4, fixed_abs, tag = 'smem constant byte address 0x4 - core index']
  #allocation1 [shape = 'u32[144,128]{1,0:T(1,128)}', space=vmem, size = 0x12000, scoped, tag = 'internal scratch']
  %s0 = inlined_call_operand.vmem [shape: f32[2,8,256], index: 0, kind: input, shape index: {}]
  %s1 = inlined_call_operand.vmem [shape: f32[32,8], index: 1, kind: input, shape index: {}]
  %s2 = inlined_call_operand.vmem [shape: f32[8,32], index: 2, kind: input, shape index: {}]
  %s3 = inlined_call_operand.vmem [shape: f32[32,16], index: 3, kind: input, shape index: {}]
  %s4 = inlined_call_operand.vmem [shape: f32[8,1], index: 4, kind: input, shape index: {}]
  %s5 = inlined_call_operand.vmem [shape: f32[4,256], index: 5, kind: input, shape index: {}]
  %s6 = inlined_call_operand.hbm [shape: f32[2,8,256], index: 6, kind: output, shape index: {}]
  %s7 = sld [smem:[#allocation0]]
  $region57: #{tpu_custom_call.1} parent=0
    _
  %s9 = ssub.s32 1, %s7
  %s10 = scalar_select 0, %s9, %s7
  $region1: #{tpu_custom_call.1} parent=0
    #allocation2 [shape = 'u8[16384]{0}', space=vmem, size = 0x4000, scoped, tag = 'output window, operand 0']
    #allocation3 [shape = 's32[2]{0}', space=sflag, size = 0x8, scoped, tag = 'scoped memory for tpu_custom_call.1']
    %11 = vsyncpa [#allocation3], 0
    %s12 = scalar_lea.sflag [#allocation3], 1
    %13 = vsyncpa %s12, 0
    loop: start=0, step=1, limit=4
    $region2: #{tpu_custom_call.1} parent=1 // loop_pre_header
      _
    $region3: #{tpu_custom_call.1} parent=1 // loop_header
      %s15 = sphi 0, %s19
      %p16 = scmp.ge.s32.totalorder %s15, 4
      %s25 = sphi 0, %s27
      %s28 = sphi 0, %s25
      %s29 = sphi 0, %s28
      %s45 = sphi 0, %s29
      %s49 = sphi 0, %s49
      %s51 = sphi 0, %s49
      %s52 = sphi 0, %s51
      %s66 = sphi 0, %s52
      %s70 = sphi 0, %s70
      %s72 = sphi 0, %s70
      %s73 = sphi 0, %s72
      %s87 = sphi 0, %s73
      %s91 = sphi 0, %s91
      %s93 = sphi 0, %s91
      %s94 = sphi 0, %s93
      %s108 = sphi 0, %s94
      %s112 = sphi 0, %s112
      %s114 = sphi 0, %s112
      %s115 = sphi 0, %s114
      %s129 = sphi 0, %s115
      %s133 = sphi 0, %s133
      %s135 = sphi 0, %s133
      %s136 = sphi 0, %s135
      %s150 = sphi 0, %s136
      %s156 = sphi 0, %s158
      %s159 = sphi 0, %s156
      %s160 = sphi 0, %s159
      %s176 = sphi 0, %s160
    $region4: #{tpu_custom_call.1} parent=1 // loop_header_branch
      %18 = sbr.rel (%p16) target = $region8
    $region5: #{tpu_custom_call.1} parent=1 // loop_body
      %s20 = ssub.s32 %s15, 1
      %s21 = ssub.s32 %s15, 2
      %s22 = sadd.s32 %s15, 1
      %s23 = ssub.s32 %s15, %s22
      %p24 = scmp.eq.s32.totalorder %s23, 0
      %s26 = sadd.s32 %s25, 1
      %s27 = scalar_select %p24, %s25, %s26
      %p30 = pneg %p24
      %p31 = scmp.eq.s32.totalorder %s15, 1
      %p32 = por %p30, %p31
      %p33 = scmp.ne.s32.totalorder %s25, %s28
      %p34 = scmp.eq.s32.totalorder %s15, 0
      %p35 = por %p33, %p34
      %p36 = scmp.ne.s32.totalorder %s25, %s28
      %p37 = scmp.eq.s32.totalorder %s20, 1
      %p38 = por %p36, %p37
      %p39 = scmp.ne.s32.totalorder %s28, %s29
      %p40 = scmp.eq.s32.totalorder %s20, 0
      %p41 = por %p39, %p40
      %p42 = scmp.ne.s32.totalorder %s28, %s29
      %p43 = scmp.eq.s32.totalorder %s21, 1
      %p44 = por %p42, %p43
      %p46 = scmp.ne.s32.totalorder %s29, %s45
      %p47 = scmp.eq.s32.totalorder %s21, 0
      %p48 = por %p46, %p47
      %s50 = sadd.s32 %s49, 1
      %p53 = scmp.eq.s32.totalorder %s15, 1
      %p54 = scmp.ne.s32.totalorder %s49, %s51
      %p55 = scmp.eq.s32.totalorder %s15, 0
      %p56 = por %p54, %p55
      %p57 = scmp.ne.s32.totalorder %s49, %s51
      %p58 = scmp.eq.s32.totalorder %s20, 1
      %p59 = por %p57, %p58
      %p60 = scmp.ne.s32.totalorder %s51, %s52
      %p61 = scmp.eq.s32.totalorder %s20, 0
      %p62 = por %p60, %p61
      %p63 = scmp.ne.s32.totalorder %s51, %s52
      %p64 = scmp.eq.s32.totalorder %s21, 1
      %p65 = por %p63, %p64
      %p67 = scmp.ne.s32.totalorder %s52, %s66
      %p68 = scmp.eq.s32.totalorder %s21, 0
      %p69 = por %p67, %p68
      %s71 = sadd.s32 %s70, 1
      %p74 = scmp.eq.s32.totalorder %s15, 1
      %p75 = scmp.ne.s32.totalorder %s70, %s72
      %p76 = scmp.eq.s32.totalorder %s15, 0
      %p77 = por %p75, %p76
      %p78 = scmp.ne.s32.totalorder %s70, %s72
      %p79 = scmp.eq.s32.totalorder %s20, 1
      %p80 = por %p78, %p79
      %p81 = scmp.ne.s32.totalorder %s72, %s73
      %p82 = scmp.eq.s32.totalorder %s20, 0
      %p83 = por %p81, %p82
      %p84 = scmp.ne.s32.totalorder %s72, %s73
      %p85 = scmp.eq.s32.totalorder %s21, 1
      %p86 = por %p84, %p85
      %p88 = scmp.ne.s32.totalorder %s73, %s87
      %p89 = scmp.eq.s32.totalorder %s21, 0
      %p90 = por %p88, %p89
      %s92 = sadd.s32 %s91, 1
      %p95 = scmp.eq.s32.totalorder %s15, 1
      %p96 = scmp.ne.s32.totalorder %s91, %s93
      %p97 = scmp.eq.s32.totalorder %s15, 0
      %p98 = por %p96, %p97
      %p99 = scmp.ne.s32.totalorder %s91, %s93
      %p100 = scmp.eq.s32.totalorder %s20, 1
      %p101 = por %p99, %p100
      %p102 = scmp.ne.s32.totalorder %s93, %s94
      %p103 = scmp.eq.s32.totalorder %s20, 0
      %p104 = por %p102, %p103
      %p105 = scmp.ne.s32.totalorder %s93, %s94
      %p106 = scmp.eq.s32.totalorder %s21, 1
      %p107 = por %p105, %p106
      %p109 = scmp.ne.s32.totalorder %s94, %s108
      %p110 = scmp.eq.s32.totalorder %s21, 0
      %p111 = por %p109, %p110
      %s113 = sadd.s32 %s112, 1
      %p116 = scmp.eq.s32.totalorder %s15, 1
      %p117 = scmp.ne.s32.totalorder %s112, %s114
      %p118 = scmp.eq.s32.totalorder %s15, 0
      %p119 = por %p117, %p118
      %p120 = scmp.ne.s32.totalorder %s112, %s114
      %p121 = scmp.eq.s32.totalorder %s20, 1
      %p122 = por %p120, %p121
      %p123 = scmp.ne.s32.totalorder %s114, %s115
      %p124 = scmp.eq.s32.totalorder %s20, 0
      %p125 = por %p123, %p124
      %p126 = scmp.ne.s32.totalorder %s114, %s115
      %p127 = scmp.eq.s32.totalorder %s21, 1
      %p128 = por %p126, %p127
      %p130 = scmp.ne.s32.totalorder %s115, %s129
      %p131 = scmp.eq.s32.totalorder %s21, 0
      %p132 = por %p130, %p131
      %s134 = sadd.s32 %s133, 1
      %p137 = scmp.eq.s32.totalorder %s15, 1
      %p138 = scmp.ne.s32.totalorder %s133, %s135
      %p139 = scmp.eq.s32.totalorder %s15, 0
      %p140 = por %p138, %p139
      %p141 = scmp.ne.s32.totalorder %s133, %s135
      %p142 = scmp.eq.s32.totalorder %s20, 1
      %p143 = por %p141, %p142
      %p144 = scmp.ne.s32.totalorder %s135, %s136
      %p145 = scmp.eq.s32.totalorder %s20, 0
      %p146 = por %p144, %p145
      %p147 = scmp.ne.s32.totalorder %s135, %s136
      %p148 = scmp.eq.s32.totalorder %s21, 1
      %p149 = por %p147, %p148
      %p151 = scmp.ne.s32.totalorder %s136, %s150
      %p152 = scmp.eq.s32.totalorder %s21, 0
      %p153 = por %p151, %p152
      %s154 = ssub.s32 %s15, %s22
      %p155 = scmp.eq.s32.totalorder %s154, 0
      %s157 = sadd.s32 %s156, 1
      %s158 = scalar_select %p155, %s156, %s157
      %p161 = pneg %p155
      %p162 = scmp.eq.s32.totalorder %s15, 1
      %p163 = por %p161, %p162
      %p164 = scmp.ne.s32.totalorder %s156, %s159
      %p165 = scmp.eq.s32.totalorder %s15, 0
      %p166 = por %p164, %p165
      %p167 = scmp.ne.s32.totalorder %s156, %s159
      %p168 = scmp.eq.s32.totalorder %s20, 1
      %p169 = por %p167, %p168
      %p170 = scmp.ne.s32.totalorder %s159, %s160
      %p171 = scmp.eq.s32.totalorder %s20, 0
      %p172 = por %p170, %p171
      %p173 = scmp.ne.s32.totalorder %s159, %s160
      %p174 = scmp.eq.s32.totalorder %s21, 1
      %p175 = por %p173, %p174
      %p177 = scmp.ne.s32.totalorder %s160, %s176
      %p178 = scmp.eq.s32.totalorder %s21, 0
      %p179 = por %p177, %p178
      %p180 = scmp.le.s32.totalorder 1, %s15
      %p181 = scmp.lt.s32.totalorder %s15, 3
      %p182 = pnand %p180, %p181
      %p183 = pneg %p182
      // Predicated region
      $region9: #{tpu_custom_call.1} parent=5 // pred_check
        _
      $region10: #{tpu_custom_call.1} parent=5 // pred_check_branch
        %185 = sbr.rel (%p182) target = $region12
      $region11: #{tpu_custom_call.1} parent=5 // pred_region
        %s186 = ssub.s32 %s15, 1
        // Predicated region
        $region13: #{tpu_custom_call.1} parent=11 // pred_check
          %p187 = pneg %p62
        $region14: #{tpu_custom_call.1} parent=11 // pred_check_branch
          %189 = sbr.rel (%p187) target = $region16
        $region15: #{tpu_custom_call.1} parent=11 // pred_region
          _
        $region16: #{tpu_custom_call.1} parent=11 // pred_fallthru
          _
        // Predicated region
        $region17: #{tpu_custom_call.1} parent=11 // pred_check
          %p190 = pneg %p83
        $region18: #{tpu_custom_call.1} parent=11 // pred_check_branch
          %192 = sbr.rel (%p190) target = $region20
        $region19: #{tpu_custom_call.1} parent=11 // pred_region
          _
        $region20: #{tpu_custom_call.1} parent=11 // pred_fallthru
          _
        // Predicated region
        $region21: #{tpu_custom_call.1} parent=11 // pred_check
          %p193 = pneg %p104
        $region22: #{tpu_custom_call.1} parent=11 // pred_check_branch
          %195 = sbr.rel (%p193) target = $region24
        $region23: #{tpu_custom_call.1} parent=11 // pred_region
          _
        $region24: #{tpu_custom_call.1} parent=11 // pred_fallthru
          _
        // Predicated region
        $region25: #{tpu_custom_call.1} parent=11 // pred_check
          %p196 = pneg %p125
        $region26: #{tpu_custom_call.1} parent=11 // pred_check_branch
          %198 = sbr.rel (%p196) target = $region28
        $region27: #{tpu_custom_call.1} parent=11 // pred_region
          _
        $region28: #{tpu_custom_call.1} parent=11 // pred_fallthru
          _
        // Predicated region
        $region29: #{tpu_custom_call.1} parent=11 // pred_check
          %p199 = pneg %p146
        $region30: #{tpu_custom_call.1} parent=11 // pred_check_branch
          %201 = sbr.rel (%p199) target = $region32
        $region31: #{tpu_custom_call.1} parent=11 // pred_region
          _
        $region32: #{tpu_custom_call.1} parent=11 // pred_fallthru
          _
      $region12: #{tpu_custom_call.1} parent=5 // pred_fallthru
        _
      %p202 = scmp.lt.s32.totalorder %s15, 2
      // Predicated region
      $region33: #{tpu_custom_call.1} parent=5 // pred_check
        %p203 = pneg %p202
      $region34: #{tpu_custom_call.1} parent=5 // pred_check_branch
        %205 = sbr.rel (%p203) target = $region36
      $region35: #{tpu_custom_call.1} parent=5 // pred_region
        // Predicated region
        $region37: #{tpu_custom_call.1} parent=35 // pred_check
          %p206 = pneg %p35
        $region38: #{tpu_custom_call.1} parent=35 // pred_check_branch
          %208 = sbr.rel (%p206) target = $region40
        $region39: #{tpu_custom_call.1} parent=35 // pred_region
          %p209 = scmp.lt.s32.totalorder %s15, 1
          %s210 = scalar_select %p209, %s15, 1
          %s211 = smul.addr %s210, 2
          %s212 = smul.addr %s211, 8
          %s213 = scalar_lea.vmem %s0, %s212
        $region40: #{tpu_custom_call.1} parent=35 // pred_fallthru
          _
      $region36: #{tpu_custom_call.1} parent=5 // pred_fallthru
        _
      %p214 = scmp.le.s32.totalorder 1, %s15
      %p215 = scmp.lt.s32.totalorder %s15, 3
      %p216 = pnand %p214, %p215
      %p217 = pneg %p216
      // Predicated region
      $region41: #{tpu_custom_call.1} parent=5 // pred_check
        _
      $region42: #{tpu_custom_call.1} parent=5 // pred_check_branch
        %219 = sbr.rel (%p216) target = $region44
      $region43: #{tpu_custom_call.1} parent=5 // pred_region
        %s220 = ssub.s32 %s15, 1
        %p221 = scmp.lt.s32.totalorder %s20, 1
        %s222 = scalar_select %p221, %s20, 1
        %s223 = smul.addr %s222, 2
        %s224 = smul.addr %s223, 8
        %s225 = scalar_lea.vmem %s0, %s224
        %p226 = pneg %p41
        %p227 = pneg %p38
        %p228 = pneg %p62
        %p229 = pneg %p59
        %p230 = pneg %p83
        %p231 = pneg %p80
        %p232 = pneg %p104
        %p233 = pneg %p101
        %p234 = pneg %p125
        %p235 = pneg %p122
        %p236 = pneg %p146
        %p237 = pneg %p143
        %p238 = pneg %p172
        %p239 = pneg %p169
        %s240 = sand.u32 %s159, 1
        %s241 = scalar_lea.sflag [#allocation3], %s240
        %s242 = sand.u32 %s159, 1
        %s243 = smul.addr %s242, 16
        %s244 = scalar_lea.vmem [#allocation2], %s243
        %p245 = scmp.lt.s32.totalorder %s20, 1
        %s246 = scalar_select %p245, %s20, 1
        %s247 = smul.addr %s246, 2
        %s248 = smul.addr %s247, 8
        %s249 = scalar_lea.vmem %s0, %s248
        %v250 = vld [vmem:[%s249] sm:$0xff]
        %v251 = vld [vmem:[%s249 + $0x8] sm:$0xff]
        %v252 = vld [vmem:[%s3] sm:$0xff]
        %v253 = vld [vmem:[%s3 + $0x8] sm:$0xff]
        %v254 = vld [vmem:[%s3 + $0x10] sm:$0xff]
        %v255 = vld [vmem:[%s3 + $0x18] sm:$0xff]
        %v256 = vld [vmem:[%s1] sm:$0xff]
        %v257 = vld [vmem:[%s1 + $0x8] sm:$0xff]
        %v258 = vld [vmem:[%s1 + $0x10] sm:$0xff]
        %v259 = vld [vmem:[%s1 + $0x18] sm:$0xff]
        %261 = vset.pattern.permute.xlu0 9
        %262 = vperm.xlu0 %261, %v252
        %v263 = vpop.permute.xlu0 %262
        %266 = vset.pattern.permute.xlu0 9
        %267 = vperm.xlu0 %266, %v253
        %v268 = vpop.permute.xlu0 %267
        %271 = vset.pattern.permute.xlu0 9
        %272 = vperm.xlu0 %271, %v254
        %v273 = vpop.permute.xlu0 %272
        %276 = vset.pattern.permute.xlu0 9
        %277 = vperm.xlu0 %276, %v255
        %v278 = vpop.permute.xlu0 %277
        %vm280 = vcmask 64512
        %v282 = vsel %vm280, %v256, 0
        %v285 = vsel %vm280, %v257, 0
        %v288 = vsel %vm280, %v258, 0
        %v291 = vsel %vm280, %v259, 0
        %293 = vmatprep.subr.mxu0 %v251
        %294 = vmatpush1.msra.mxu0 %v250
        %295 = vmatprep.subr.mxu0 0.0
        %296 = vmatpush1.msra.mxu0 0.0
        %297 = vmatprep.subr.mxu0 0.0
        %298 = vmatpush1.msra.mxu0 0.0
        %299 = vmatprep.subr.mxu0 0.0
        %300 = vmatpush1.msra.mxu0 0.0
        %301 = vmatprep.subr.mxu0 0.0
        %302 = vmatpush1.msra.mxu0 0.0
        %303 = vmatprep.subr.mxu0 0.0
        %304 = vmatpush1.msra.mxu0 0.0
        %305 = vmatprep.subr.mxu0 0.0
        %306 = vmatpush1.msra.mxu0 0.0
        %307 = vmatprep.subr.mxu0 0.0
        %308 = vmatpush1.msra.mxu0 0.0
        %309 = vmatprep.subr.mxu0 0.0
        %310 = vmatpush1.msra.mxu0 0.0
        %311 = vmatprep.subr.mxu0 0.0
        %312 = vmatpush1.msra.mxu0 0.0
        %313 = vmatprep.subr.mxu0 0.0
        %314 = vmatpush1.msra.mxu0 0.0
        %315 = vmatprep.subr.mxu0 0.0
        %316 = vmatpush1.msra.mxu0 0.0
        %317 = vmatprep.subr.mxu0 0.0
        %318 = vmatpush1.msra.mxu0 0.0
        %319 = vmatprep.subr.mxu0 0.0
        %320 = vmatpush1.msra.mxu0 0.0
        %321 = vmatprep.subr.mxu0 0.0
        %322 = vmatpush1.msra.mxu0 0.0
        %323 = vmatprep.subr.mxu0 0.0
        %324 = vmatpush1.msra.mxu0 0.0
        %325 = vmatprep.subr.mxu0 0.0
        %326 = vmatpush1.msra.mxu0 0.0
        %327 = vmatprep.subr.mxu0 0.0
        %328 = vmatpush1.msra.mxu0 0.0
        %329 = vmatprep.subr.mxu0 0.0
        %330 = vmatpush1.msra.mxu0 0.0
        %331 = vmatprep.subr.mxu0 0.0
        %332 = vmatpush1.msra.mxu0 0.0
        %333 = vmatprep.subr.mxu0 0.0
        %334 = vmatpush1.msra.mxu0 0.0
        %335 = vmatprep.subr.mxu0 0.0
        %336 = vmatpush1.msra.mxu0 0.0
        %337 = vmatprep.subr.mxu0 0.0
        %338 = vmatpush1.msra.mxu0 0.0
        %339 = vmatprep.subr.mxu0 0.0
        %340 = vmatpush1.msra.mxu0 0.0
        %341 = vmatprep.subr.mxu0 0.0
        %342 = vmatpush1.msra.mxu0 0.0
        %343 = vmatprep.subr.mxu0 0.0
        %344 = vmatpush1.msra.mxu0 0.0
        %345 = vmatprep.subr.mxu0 0.0
        %346 = vmatpush1.msra.mxu0 0.0
        %347 = vmatprep.subr.mxu0 0.0
        %348 = vmatpush1.msra.mxu0 0.0
        %349 = vmatprep.subr.mxu0 0.0
        %350 = vmatpush1.msra.mxu0 0.0
        %351 = vmatprep.subr.mxu0 0.0
        %352 = vmatpush1.msra.mxu0 0.0
        %353 = vmatprep.subr.mxu0 0.0
        %354 = vmatpush1.msra.mxu0 0.0
        %355 = vmatprep.subr.mxu0 0.0
        %356 = vmatpush1.msra.mxu0 0.0
        %357 = vmatprep.mubr.f32.mxu0 0.0
        %358 = vmatmul.mubr.f32.gmra.mrb[0].mxu0 %v282
        %v359 = vpop.f32.mrb[0].mxu0
        %v360 = vadd.f32 %v263, %v359
        %v361 = vpop.f32.mrb[0].mxu0
        %v362 = vadd.f32 %v263, %v361
        %363 = vmatprep.mubr.f32.mxu0 0.0
        %364 = vmatmul.mubr.f32.gmra.mrb[0].mxu0 %v285
        %v365 = vpop.f32.mrb[0].mxu0
        %v366 = vadd.f32 %v268, %v365
        %v367 = vpop.f32.mrb[0].mxu0
        %v368 = vadd.f32 %v268, %v367
        %369 = vmatprep.mubr.f32.mxu0 0.0
        %370 = vmatmul.mubr.f32.gmra.mrb[0].mxu0 %v288
        %v371 = vpop.f32.mrb[0].mxu0
        %v372 = vadd.f32 %v273, %v371
        %v373 = vpop.f32.mrb[0].mxu0
        %v374 = vadd.f32 %v273, %v373
        %375 = vmatprep.mubr.f32.mxu0 0.0
        %376 = vmatmul.mubr.f32.gmra.mrb[0].mxu0 %v291
        %v377 = vpop.f32.mrb[0].mxu0
        %v378 = vadd.f32 %v278, %v377
        %v379 = vpop.f32.mrb[0].mxu0
        %v380 = vadd.f32 %v278, %v379
        %381 = vdwg.mxu0
        %v382 = vmul.f32 %v360, 0.5
        %v383 = vmul.f32 %v362, 0.5
        %v384 = vmul.f32 %v366, 0.5
        %v385 = vmul.f32 %v368, 0.5
        %v386 = vmul.f32 %v372, 0.5
        %v387 = vmul.f32 %v374, 0.5
        %v388 = vmul.f32 %v378, 0.5
        %v389 = vmul.f32 %v380, 0.5
        %v390 = vmul.f32 %v360, %v360
        %v391 = vmul.f32 %v362, %v362
        %v392 = vmul.f32 %v366, %v366
        %v393 = vmul.f32 %v368, %v368
        %v394 = vmul.f32 %v372, %v372
        %v395 = vmul.f32 %v374, %v374
        %v396 = vmul.f32 %v378, %v378
        %v397 = vmul.f32 %v380, %v380
        %v398 = vmul.f32 %v390, %v360
        %v399 = vmul.f32 %v391, %v362
        %v400 = vmul.f32 %v392, %v366
        %v401 = vmul.f32 %v393, %v368
        %v402 = vmul.f32 %v394, %v372
        %v403 = vmul.f32 %v395, %v374
        %v404 = vmul.f32 %v396, %v378
        %v405 = vmul.f32 %v397, %v380
        %v406 = vmul.f32 %v398, 0.044715
        %v407 = vmul.f32 %v399, 0.044715
        %v408 = vmul.f32 %v400, 0.044715
        %v409 = vmul.f32 %v401, 0.044715
        %v410 = vmul.f32 %v402, 0.044715
        %v411 = vmul.f32 %v403, 0.044715
        %v412 = vmul.f32 %v404, 0.044715
        %v413 = vmul.f32 %v405, 0.044715
        %v414 = vadd.f32 %v360, %v406
        %v415 = vadd.f32 %v362, %v407
        %v416 = vadd.f32 %v366, %v408
        %v417 = vadd.f32 %v368, %v409
        %v418 = vadd.f32 %v372, %v410
        %v419 = vadd.f32 %v374, %v411
        %v420 = vadd.f32 %v378, %v412
        %v421 = vadd.f32 %v380, %v413
        %v422 = vmul.f32 %v414, 0.7978846
        %v423 = vmul.f32 %v415, 0.7978846
        %v424 = vmul.f32 %v416, 0.7978846
        %v425 = vmul.f32 %v417, 0.7978846
        %v426 = vmul.f32 %v418, 0.7978846
        %v427 = vmul.f32 %v419, 0.7978846
        %v428 = vmul.f32 %v420, 0.7978846
        %v429 = vmul.f32 %v421, 0.7978846
        %v430 = vtanh.pop %v422
        %v431 = vtanh.pop %v423
        %v432 = vtanh.pop %v424
        %v433 = vtanh.pop %v425
        %v434 = vtanh.pop %v426
        %v435 = vtanh.pop %v427
        %v436 = vtanh.pop %v428
        %v437 = vtanh.pop %v429
        %v438 = vadd.f32 %v430, 1.0
        %v439 = vadd.f32 %v431, 1.0
        %v440 = vadd.f32 %v432, 1.0
        %v441 = vadd.f32 %v433, 1.0
        %v442 = vadd.f32 %v434, 1.0
        %v443 = vadd.f32 %v435, 1.0
        %v444 = vadd.f32 %v436, 1.0
        %v445 = vadd.f32 %v437, 1.0
        %v446 = vmul.f32 %v382, %v438
        %v447 = vmul.f32 %v383, %v439
        %v448 = vmul.f32 %v384, %v440
        %v449 = vmul.f32 %v385, %v441
        %v450 = vmul.f32 %v386, %v442
        %v451 = vmul.f32 %v387, %v443
        %v452 = vmul.f32 %v388, %v444
        %v453 = vmul.f32 %v389, %v445
        %v454 = vld [vmem:[%s5] sm:$0xff]
        %455 = vrot.lane.b32.xlu0 %v446, 16
        %v456 = vpop.permute.xlu0 %455
        %457 = vrot.lane.b32.xlu0 %v448, 16
        %v458 = vpop.permute.xlu0 %457
        %459 = vrot.lane.b32.xlu0 %v450, 16
        %v460 = vpop.permute.xlu0 %459
        %461 = vrot.lane.b32.xlu0 %v452, 16
        %v462 = vpop.permute.xlu0 %461
        %463 = vrot.lane.b32.xlu0 %v447, 16
        %v464 = vpop.permute.xlu0 %463
        %465 = vrot.lane.b32.xlu0 %v449, 16
        %v466 = vpop.permute.xlu0 %465
        %467 = vrot.lane.b32.xlu0 %v451, 16
        %v468 = vpop.permute.xlu0 %467
        %469 = vrot.lane.b32.xlu0 %v453, 16
        %v470 = vpop.permute.xlu0 %469
        %v471 = vlaneseq
        %v472 = vand.u32 %v471, 127
        %vm473 = vcmp.lt.s32.totalorder %v472, 16
        %v474 = vsel %vm473, %v456, %v464
        %v475 = vsel %vm473, %v458, %v466
        %v476 = vsel %vm473, %v460, %v468
        %v477 = vsel %vm473, %v462, %v470
        %v478 = vsel %vm473, %v464, %v456
        %v479 = vsel %vm473, %v466, %v458
        %v480 = vsel %vm473, %v468, %v460
        %v481 = vsel %vm473, %v470, %v462
        %482 = vrot.lane.b32.xlu0 %v478, 1
        %v483 = vpop.permute.xlu0 %482
        %484 = vrot.lane.b32.xlu0 %v479, 1
        %v485 = vpop.permute.xlu0 %484
        %486 = vrot.lane.b32.xlu0 %v480, 1
        %v487 = vpop.permute.xlu0 %486
        %488 = vrot.lane.b32.xlu0 %v481, 1
        %v489 = vpop.permute.xlu0 %488
        %490 = vrot.lane.b32.xlu0 %v474, 1
        %v491 = vpop.permute.xlu0 %490
        %492 = vrot.lane.b32.xlu0 %v475, 1
        %v493 = vpop.permute.xlu0 %492
        %494 = vrot.lane.b32.xlu0 %v476, 1
        %v495 = vpop.permute.xlu0 %494
        %496 = vrot.lane.b32.xlu0 %v477, 1
        %v497 = vpop.permute.xlu0 %496
        %vm498 = vcmp.lt.s32.totalorder %v472, 1
        %v499 = vsel %vm498, %v483, %v491
        %v500 = vsel %vm498, %v485, %v493
        %v501 = vsel %vm498, %v487, %v495
        %v502 = vsel %vm498, %v489, %v497
        %v503 = vsel %vm498, %v491, %v483
        %v504 = vsel %vm498, %v493, %v485
        %v505 = vsel %vm498, %v495, %v487
        %v506 = vsel %vm498, %v497, %v489
        %507 = vrot.lane.b32.xlu0 %v478, 127
        %v508 = vpop.permute.xlu0 %507
        %509 = vrot.lane.b32.xlu0 %v479, 127
        %v510 = vpop.permute.xlu0 %509
        %511 = vrot.lane.b32.xlu0 %v480, 127
        %v512 = vpop.permute.xlu0 %511
        %513 = vrot.lane.b32.xlu0 %v481, 127
        %v514 = vpop.permute.xlu0 %513
        %515 = vrot.lane.b32.xlu0 %v474, 127
        %v516 = vpop.permute.xlu0 %515
        %517 = vrot.lane.b32.xlu0 %v475, 127
        %v518 = vpop.permute.xlu0 %517
        %519 = vrot.lane.b32.xlu0 %v476, 127
        %v520 = vpop.permute.xlu0 %519
        %521 = vrot.lane.b32.xlu0 %v477, 127
        %v522 = vpop.permute.xlu0 %521
        %vm523 = vcmp.lt.s32.totalorder %v472, 127
        %v524 = vsel %vm523, %v508, %v516
        %v525 = vsel %vm523, %v510, %v518
        %v526 = vsel %vm523, %v512, %v520
        %v527 = vsel %vm523, %v514, %v522
        %v528 = vsel %vm523, %v516, %v508
        %v529 = vsel %vm523, %v518, %v510
        %v530 = vsel %vm523, %v520, %v512
        %v531 = vsel %vm523, %v522, %v514
        %532 = vset.pattern.permute.xlu0 1
        %533 = vperm.xlu0 %532, %v252
        %v534 = vpop.permute.xlu0 %533
        %536 = vset.pattern.permute.xlu0 1
        %537 = vperm.xlu0 %536, %v253
        %v538 = vpop.permute.xlu0 %537
        %540 = vset.pattern.permute.xlu0 1
        %541 = vperm.xlu0 %540, %v254
        %v542 = vpop.permute.xlu0 %541
        %544 = vset.pattern.permute.xlu0 1
        %545 = vperm.xlu0 %544, %v255
        %v546 = vpop.permute.xlu0 %545
        %v548 = vmul.f32 %v478, %v534
        %v549 = vmul.f32 %v474, %v534
        %v550 = vmul.f32 %v479, %v538
        %v551 = vmul.f32 %v475, %v538
        %v552 = vmul.f32 %v480, %v542
        %v553 = vmul.f32 %v476, %v542
        %v554 = vmul.f32 %v481, %v546
        %v555 = vmul.f32 %v477, %v546
        %556 = vset.pattern.permute.xlu0 0
        %557 = vperm.xlu0 %556, %v252
        %v558 = vpop.permute.xlu0 %557
        %560 = vset.pattern.permute.xlu0 0
        %561 = vperm.xlu0 %560, %v253
        %v562 = vpop.permute.xlu0 %561
        %564 = vset.pattern.permute.xlu0 0
        %565 = vperm.xlu0 %564, %v254
        %v566 = vpop.permute.xlu0 %565
        %568 = vset.pattern.permute.xlu0 0
        %569 = vperm.xlu0 %568, %v255
        %v570 = vpop.permute.xlu0 %569
        %v572 = vmul.f32 %v503, %v558
        %v573 = vmul.f32 %v499, %v558
        %v574 = vmul.f32 %v504, %v562
        %v575 = vmul.f32 %v500, %v562
        %v576 = vmul.f32 %v505, %v566
        %v577 = vmul.f32 %v501, %v566
        %v578 = vmul.f32 %v506, %v570
        %v579 = vmul.f32 %v502, %v570
        %v581 = vlaneseq
        %v582 = vshrl.u32 %v581, 7
        %v583 = vsub.s32 2, %v582
        %v584 = vrot.slane %v454, %v583
        %v585 = vlaneseq
        %v586 = vshrl.u32 %v585, 7
        %v587 = vsub.s32 6, %v586
        %v588 = vrot.slane %v454, %v587
        %v591 = vlaneseq
        %v592 = vshrl.u32 %v591, 7
        %v593 = vsub.s32 2, %v592
        %v594 = vrot.slane %v584, %v593
        %v595 = vlaneseq
        %v596 = vshrl.u32 %v595, 7
        %v597 = vsub.s32 2, %v596
        %v598 = vrot.slane %v588, %v597
        %v599 = vmul.f32 %v572, %v594
        %v600 = vmul.f32 %v573, %v598
        %v601 = vmul.f32 %v574, %v594
        %v602 = vmul.f32 %v575, %v598
        %v603 = vmul.f32 %v576, %v594
        %v604 = vmul.f32 %v577, %v598
        %v605 = vmul.f32 %v578, %v594
        %v606 = vmul.f32 %v579, %v598
        %v607 = vadd.f32 %v548, %v599
        %v608 = vadd.f32 %v549, %v600
        %v609 = vadd.f32 %v550, %v601
        %v610 = vadd.f32 %v551, %v602
        %v611 = vadd.f32 %v552, %v603
        %v612 = vadd.f32 %v553, %v604
        %v613 = vadd.f32 %v554, %v605
        %v614 = vadd.f32 %v555, %v606
        %615 = vset.pattern.permute.xlu0 2
        %616 = vperm.xlu0 %615, %v252
        %v617 = vpop.permute.xlu0 %616
        %619 = vset.pattern.permute.xlu0 2
        %620 = vperm.xlu0 %619, %v253
        %v621 = vpop.permute.xlu0 %620
        %623 = vset.pattern.permute.xlu0 2
        %624 = vperm.xlu0 %623, %v254
        %v625 = vpop.permute.xlu0 %624
        %627 = vset.pattern.permute.xlu0 2
        %628 = vperm.xlu0 %627, %v255
        %v629 = vpop.permute.xlu0 %628
        %v631 = vmul.f32 %v524, %v617
        %v632 = vmul.f32 %v528, %v617
        %v633 = vmul.f32 %v525, %v621
        %v634 = vmul.f32 %v529, %v621
        %v635 = vmul.f32 %v526, %v625
        %v636 = vmul.f32 %v530, %v625
        %v637 = vmul.f32 %v527, %v629
        %v638 = vmul.f32 %v531, %v629
        %v639 = vlaneseq
        %v640 = vshrl.u32 %v639, 7
        %v641 = vsub.s32 3, %v640
        %v642 = vrot.slane %v454, %v641
        %v643 = vlaneseq
        %v644 = vshrl.u32 %v643, 7
        %v645 = vsub.s32 7, %v644
        %v646 = vrot.slane %v454, %v645
        %v649 = vlaneseq
        %v650 = vshrl.u32 %v649, 7
        %v651 = vsub.s32 3, %v650
        %v652 = vrot.slane %v642, %v651
        %v653 = vlaneseq
        %v654 = vshrl.u32 %v653, 7
        %v655 = vsub.s32 3, %v654
        %v656 = vrot.slane %v646, %v655
        %v657 = vmul.f32 %v631, %v652
        %v658 = vmul.f32 %v632, %v656
        %v659 = vmul.f32 %v633, %v652
        %v660 = vmul.f32 %v634, %v656
        %v661 = vmul.f32 %v635, %v652
        %v662 = vmul.f32 %v636, %v656
        %v663 = vmul.f32 %v637, %v652
        %v664 = vmul.f32 %v638, %v656
        %v665 = vadd.f32 %v607, %v657
        %v666 = vadd.f32 %v608, %v658
        %v667 = vadd.f32 %v609, %v659
        %v668 = vadd.f32 %v610, %v660
        %v669 = vadd.f32 %v611, %v661
        %v670 = vadd.f32 %v612, %v662
        %v671 = vadd.f32 %v613, %v663
        %v672 = vadd.f32 %v614, %v664
        %v673 = vlaneseq
        %v674 = vshrl.u32 %v673, 7
        %v675 = vsub.s32 0, %v674
        %v676 = vrot.slane %v454, %v675
        %v677 = vlaneseq
        %v678 = vshrl.u32 %v677, 7
        %v679 = vsub.s32 4, %v678
        %v680 = vrot.slane %v454, %v679
        %v683 = vlaneseq
        %v684 = vshrl.u32 %v683, 7
        %v685 = vsub.s32 0, %v684
        %v686 = vrot.slane %v676, %v685
        %v687 = vlaneseq
        %v688 = vshrl.u32 %v687, 7
        %v689 = vsub.s32 0, %v688
        %v690 = vrot.slane %v680, %v689
        %v691 = vmul.f32 %v665, %v686
        %v692 = vmul.f32 %v666, %v690
        %v693 = vmul.f32 %v667, %v686
        %v694 = vmul.f32 %v668, %v690
        %v695 = vmul.f32 %v669, %v686
        %v696 = vmul.f32 %v670, %v690
        %v697 = vmul.f32 %v671, %v686
        %v698 = vmul.f32 %v672, %v690
        %699 = vrot.lane.b32.xlu0 %v446, 1
        %v700 = vpop.permute.xlu0 %699
        %701 = vrot.lane.b32.xlu0 %v448, 1
        %v702 = vpop.permute.xlu0 %701
        %703 = vrot.lane.b32.xlu0 %v450, 1
        %v704 = vpop.permute.xlu0 %703
        %705 = vrot.lane.b32.xlu0 %v452, 1
        %v706 = vpop.permute.xlu0 %705
        %707 = vrot.lane.b32.xlu0 %v447, 1
        %v708 = vpop.permute.xlu0 %707
        %709 = vrot.lane.b32.xlu0 %v449, 1
        %v710 = vpop.permute.xlu0 %709
        %711 = vrot.lane.b32.xlu0 %v451, 1
        %v712 = vpop.permute.xlu0 %711
        %713 = vrot.lane.b32.xlu0 %v453, 1
        %v714 = vpop.permute.xlu0 %713
        %v715 = vsel %vm498, %v700, %v708
        %v716 = vsel %vm498, %v702, %v710
        %v717 = vsel %vm498, %v704, %v712
        %v718 = vsel %vm498, %v706, %v714
        %v719 = vsel %vm498, %v708, %v700
        %v720 = vsel %vm498, %v710, %v702
        %v721 = vsel %vm498, %v712, %v704
        %v722 = vsel %vm498, %v714, %v706
        %723 = vrot.lane.b32.xlu0 %v446, 127
        %v724 = vpop.permute.xlu0 %723
        %725 = vrot.lane.b32.xlu0 %v448, 127
        %v726 = vpop.permute.xlu0 %725
        %727 = vrot.lane.b32.xlu0 %v450, 127
        %v728 = vpop.permute.xlu0 %727
        %729 = vrot.lane.b32.xlu0 %v452, 127
        %v730 = vpop.permute.xlu0 %729
        %731 = vrot.lane.b32.xlu0 %v447, 127
        %v732 = vpop.permute.xlu0 %731
        %733 = vrot.lane.b32.xlu0 %v449, 127
        %v734 = vpop.permute.xlu0 %733
        %735 = vrot.lane.b32.xlu0 %v451, 127
        %v736 = vpop.permute.xlu0 %735
        %737 = vrot.lane.b32.xlu0 %v453, 127
        %v738 = vpop.permute.xlu0 %737
        %v739 = vsel %vm523, %v724, %v732
        %v740 = vsel %vm523, %v726, %v734
        %v741 = vsel %vm523, %v728, %v736
        %v742 = vsel %vm523, %v730, %v738
        %v743 = vsel %vm523, %v732, %v724
        %v744 = vsel %vm523, %v734, %v726
        %v745 = vsel %vm523, %v736, %v728
        %v746 = vsel %vm523, %v738, %v730
        %747 = vset.pattern.permute.xlu0 4
        %748 = vperm.xlu0 %747, %v252
        %v749 = vpop.permute.xlu0 %748
        %751 = vset.pattern.permute.xlu0 4
        %752 = vperm.xlu0 %751, %v253
        %v753 = vpop.permute.xlu0 %752
        %755 = vset.pattern.permute.xlu0 4
        %756 = vperm.xlu0 %755, %v254
        %v757 = vpop.permute.xlu0 %756
        %759 = vset.pattern.permute.xlu0 4
        %760 = vperm.xlu0 %759, %v255
        %v761 = vpop.permute.xlu0 %760
        %v763 = vmul.f32 %v446, %v749
        %v764 = vmul.f32 %v447, %v749
        %v765 = vmul.f32 %v448, %v753
        %v766 = vmul.f32 %v449, %v753
        %v767 = vmul.f32 %v450, %v757
        %v768 = vmul.f32 %v451, %v757
        %v769 = vmul.f32 %v452, %v761
        %v770 = vmul.f32 %v453, %v761
        %771 = vset.pattern.permute.xlu0 3
        %772 = vperm.xlu0 %771, %v252
        %v773 = vpop.permute.xlu0 %772
        %775 = vset.pattern.permute.xlu0 3
        %776 = vperm.xlu0 %775, %v253
        %v777 = vpop.permute.xlu0 %776
        %779 = vset.pattern.permute.xlu0 3
        %780 = vperm.xlu0 %779, %v254
        %v781 = vpop.permute.xlu0 %780
        %783 = vset.pattern.permute.xlu0 3
        %784 = vperm.xlu0 %783, %v255
        %v785 = vpop.permute.xlu0 %784
        %v787 = vmul.f32 %v719, %v773
        %v788 = vmul.f32 %v715, %v773
        %v789 = vmul.f32 %v720, %v777
        %v790 = vmul.f32 %v716, %v777
        %v791 = vmul.f32 %v721, %v781
        %v792 = vmul.f32 %v717, %v781
        %v793 = vmul.f32 %v722, %v785
        %v794 = vmul.f32 %v718, %v785
        %v795 = vmul.f32 %v787, %v594
        %v796 = vmul.f32 %v788, %v598
        %v797 = vmul.f32 %v789, %v594
        %v798 = vmul.f32 %v790, %v598
        %v799 = vmul.f32 %v791, %v594
        %v800 = vmul.f32 %v792, %v598
        %v801 = vmul.f32 %v793, %v594
        %v802 = vmul.f32 %v794, %v598
        %v803 = vadd.f32 %v763, %v795
        %v804 = vadd.f32 %v764, %v796
        %v805 = vadd.f32 %v765, %v797
        %v806 = vadd.f32 %v766, %v798
        %v807 = vadd.f32 %v767, %v799
        %v808 = vadd.f32 %v768, %v800
        %v809 = vadd.f32 %v769, %v801
        %v810 = vadd.f32 %v770, %v802
        %811 = vset.pattern.permute.xlu0 5
        %812 = vperm.xlu0 %811, %v252
        %v813 = vpop.permute.xlu0 %812
        %815 = vset.pattern.permute.xlu0 5
        %816 = vperm.xlu0 %815, %v253
        %v817 = vpop.permute.xlu0 %816
        %819 = vset.pattern.permute.xlu0 5
        %820 = vperm.xlu0 %819, %v254
        %v821 = vpop.permute.xlu0 %820
        %823 = vset.pattern.permute.xlu0 5
        %824 = vperm.xlu0 %823, %v255
        %v825 = vpop.permute.xlu0 %824
        %v827 = vmul.f32 %v739, %v813
        %v828 = vmul.f32 %v743, %v813
        %v829 = vmul.f32 %v740, %v817
        %v830 = vmul.f32 %v744, %v817
        %v831 = vmul.f32 %v741, %v821
        %v832 = vmul.f32 %v745, %v821
        %v833 = vmul.f32 %v742, %v825
        %v834 = vmul.f32 %v746, %v825
        %v835 = vmul.f32 %v827, %v652
        %v836 = vmul.f32 %v828, %v656
        %v837 = vmul.f32 %v829, %v652
        %v838 = vmul.f32 %v830, %v656
        %v839 = vmul.f32 %v831, %v652
        %v840 = vmul.f32 %v832, %v656
        %v841 = vmul.f32 %v833, %v652
        %v842 = vmul.f32 %v834, %v656
        %v843 = vadd.f32 %v803, %v835
        %v844 = vadd.f32 %v804, %v836
        %v845 = vadd.f32 %v805, %v837
        %v846 = vadd.f32 %v806, %v838
        %v847 = vadd.f32 %v807, %v839
        %v848 = vadd.f32 %v808, %v840
        %v849 = vadd.f32 %v809, %v841
        %v850 = vadd.f32 %v810, %v842
        %851 = vrot.lane.b32.xlu0 %v446, 112
        %v852 = vpop.permute.xlu0 %851
        %853 = vrot.lane.b32.xlu0 %v448, 112
        %v854 = vpop.permute.xlu0 %853
        %855 = vrot.lane.b32.xlu0 %v450, 112
        %v856 = vpop.permute.xlu0 %855
        %857 = vrot.lane.b32.xlu0 %v452, 112
        %v858 = vpop.permute.xlu0 %857
        %859 = vrot.lane.b32.xlu0 %v447, 112
        %v860 = vpop.permute.xlu0 %859
        %861 = vrot.lane.b32.xlu0 %v449, 112
        %v862 = vpop.permute.xlu0 %861
        %863 = vrot.lane.b32.xlu0 %v451, 112
        %v864 = vpop.permute.xlu0 %863
        %865 = vrot.lane.b32.xlu0 %v453, 112
        %v866 = vpop.permute.xlu0 %865
        %vm867 = vcmp.lt.s32.totalorder %v472, 112
        %v868 = vsel %vm867, %v852, %v860
        %v869 = vsel %vm867, %v854, %v862
        %v870 = vsel %vm867, %v856, %v864
        %v871 = vsel %vm867, %v858, %v866
        %v872 = vsel %vm867, %v860, %v852
        %v873 = vsel %vm867, %v862, %v854
        %v874 = vsel %vm867, %v864, %v856
        %v875 = vsel %vm867, %v866, %v858
        %876 = vrot.lane.b32.xlu0 %v868, 1
        %v877 = vpop.permute.xlu0 %876
        %878 = vrot.lane.b32.xlu0 %v869, 1
        %v879 = vpop.permute.xlu0 %878
        %880 = vrot.lane.b32.xlu0 %v870, 1
        %v881 = vpop.permute.xlu0 %880
        %882 = vrot.lane.b32.xlu0 %v871, 1
        %v883 = vpop.permute.xlu0 %882
        %884 = vrot.lane.b32.xlu0 %v872, 1
        %v885 = vpop.permute.xlu0 %884
        %886 = vrot.lane.b32.xlu0 %v873, 1
        %v887 = vpop.permute.xlu0 %886
        %888 = vrot.lane.b32.xlu0 %v874, 1
        %v889 = vpop.permute.xlu0 %888
        %890 = vrot.lane.b32.xlu0 %v875, 1
        %v891 = vpop.permute.xlu0 %890
        %v892 = vsel %vm498, %v877, %v885
        %v893 = vsel %vm498, %v879, %v887
        %v894 = vsel %vm498, %v881, %v889
        %v895 = vsel %vm498, %v883, %v891
        %v896 = vsel %vm498, %v885, %v877
        %v897 = vsel %vm498, %v887, %v879
        %v898 = vsel %vm498, %v889, %v881
        %v899 = vsel %vm498, %v891, %v883
        %900 = vrot.lane.b32.xlu0 %v868, 127
        %v901 = vpop.permute.xlu0 %900
        %902 = vrot.lane.b32.xlu0 %v869, 127
        %v903 = vpop.permute.xlu0 %902
        %904 = vrot.lane.b32.xlu0 %v870, 127
        %v905 = vpop.permute.xlu0 %904
        %906 = vrot.lane.b32.xlu0 %v871, 127
        %v907 = vpop.permute.xlu0 %906
        %908 = vrot.lane.b32.xlu0 %v872, 127
        %v909 = vpop.permute.xlu0 %908
        %910 = vrot.lane.b32.xlu0 %v873, 127
        %v911 = vpop.permute.xlu0 %910
        %912 = vrot.lane.b32.xlu0 %v874, 127
        %v913 = vpop.permute.xlu0 %912
        %914 = vrot.lane.b32.xlu0 %v875, 127
        %v915 = vpop.permute.xlu0 %914
        %v916 = vsel %vm523, %v901, %v909
        %v917 = vsel %vm523, %v903, %v911
        %v918 = vsel %vm523, %v905, %v913
        %v919 = vsel %vm523, %v907, %v915
        %v920 = vsel %vm523, %v909, %v901
        %v921 = vsel %vm523, %v911, %v903
        %v922 = vsel %vm523, %v913, %v905
        %v923 = vsel %vm523, %v915, %v907
        %924 = vset.pattern.permute.xlu0 7
        %925 = vperm.xlu0 %924, %v252
        %v926 = vpop.permute.xlu0 %925
        %928 = vset.pattern.permute.xlu0 7
        %929 = vperm.xlu0 %928, %v253
        %v930 = vpop.permute.xlu0 %929
        %932 = vset.pattern.permute.xlu0 7
        %933 = vperm.xlu0 %932, %v254
        %v934 = vpop.permute.xlu0 %933
        %936 = vset.pattern.permute.xlu0 7
        %937 = vperm.xlu0 %936, %v255
        %v938 = vpop.permute.xlu0 %937
        %v940 = vmul.f32 %v868, %v926
        %v941 = vmul.f32 %v872, %v926
        %v942 = vmul.f32 %v869, %v930
        %v943 = vmul.f32 %v873, %v930
        %v944 = vmul.f32 %v870, %v934
        %v945 = vmul.f32 %v874, %v934
        %v946 = vmul.f32 %v871, %v938
        %v947 = vmul.f32 %v875, %v938
        %948 = vset.pattern.permute.xlu0 6
        %949 = vperm.xlu0 %948, %v252
        %v950 = vpop.permute.xlu0 %949
        %952 = vset.pattern.permute.xlu0 6
        %953 = vperm.xlu0 %952, %v253
        %v954 = vpop.permute.xlu0 %953
        %956 = vset.pattern.permute.xlu0 6
        %957 = vperm.xlu0 %956, %v254
        %v958 = vpop.permute.xlu0 %957
        %960 = vset.pattern.permute.xlu0 6
        %961 = vperm.xlu0 %960, %v255
        %v962 = vpop.permute.xlu0 %961
        %v964 = vmul.f32 %v896, %v950
        %v965 = vmul.f32 %v892, %v950
        %v966 = vmul.f32 %v897, %v954
        %v967 = vmul.f32 %v893, %v954
        %v968 = vmul.f32 %v898, %v958
        %v969 = vmul.f32 %v894, %v958
        %v970 = vmul.f32 %v899, %v962
        %v971 = vmul.f32 %v895, %v962
        %v972 = vmul.f32 %v964, %v594
        %v973 = vmul.f32 %v965, %v598
        %v974 = vmul.f32 %v966, %v594
        %v975 = vmul.f32 %v967, %v598
        %v976 = vmul.f32 %v968, %v594
        %v977 = vmul.f32 %v969, %v598
        %v978 = vmul.f32 %v970, %v594
        %v979 = vmul.f32 %v971, %v598
        %v980 = vadd.f32 %v940, %v972
        %v981 = vadd.f32 %v941, %v973
        %v982 = vadd.f32 %v942, %v974
        %v983 = vadd.f32 %v943, %v975
        %v984 = vadd.f32 %v944, %v976
        %v985 = vadd.f32 %v945, %v977
        %v986 = vadd.f32 %v946, %v978
        %v987 = vadd.f32 %v947, %v979
        %988 = vset.pattern.permute.xlu0 8
        %989 = vperm.xlu0 %988, %v252
        %v990 = vpop.permute.xlu0 %989
        %992 = vset.pattern.permute.xlu0 8
        %993 = vperm.xlu0 %992, %v253
        %v994 = vpop.permute.xlu0 %993
        %996 = vset.pattern.permute.xlu0 8
        %997 = vperm.xlu0 %996, %v254
        %v998 = vpop.permute.xlu0 %997
        %1000 = vset.pattern.permute.xlu0 8
        %1001 = vperm.xlu0 %1000, %v255
        %v1002 = vpop.permute.xlu0 %1001
        %v1004 = vmul.f32 %v916, %v990
        %v1005 = vmul.f32 %v920, %v990
        %v1006 = vmul.f32 %v917, %v994
        %v1007 = vmul.f32 %v921, %v994
        %v1008 = vmul.f32 %v918, %v998
        %v1009 = vmul.f32 %v922, %v998
        %v1010 = vmul.f32 %v919, %v1002
        %v1011 = vmul.f32 %v923, %v1002
        %v1012 = vmul.f32 %v1004, %v652
        %v1013 = vmul.f32 %v1005, %v656
        %v1014 = vmul.f32 %v1006, %v652
        %v1015 = vmul.f32 %v1007, %v656
        %v1016 = vmul.f32 %v1008, %v652
        %v1017 = vmul.f32 %v1009, %v656
        %v1018 = vmul.f32 %v1010, %v652
        %v1019 = vmul.f32 %v1011, %v656
        %v1020 = vadd.f32 %v980, %v1012
        %v1021 = vadd.f32 %v981, %v1013
        %v1022 = vadd.f32 %v982, %v1014
        %v1023 = vadd.f32 %v983, %v1015
        %v1024 = vadd.f32 %v984, %v1016
        %v1025 = vadd.f32 %v985, %v1017
        %v1026 = vadd.f32 %v986, %v1018
        %v1027 = vadd.f32 %v987, %v1019
        %v1028 = vlaneseq
        %v1029 = vshrl.u32 %v1028, 7
        %v1030 = vsub.s32 1, %v1029
        %v1031 = vrot.slane %v454, %v1030
        %v1032 = vlaneseq
        %v1033 = vshrl.u32 %v1032, 7
        %v1034 = vsub.s32 5, %v1033
        %v1035 = vrot.slane %v454, %v1034
        %v1038 = vlaneseq
        %v1039 = vshrl.u32 %v1038, 7
        %v1040 = vsub.s32 1, %v1039
        %v1041 = vrot.slane %v1031, %v1040
        %v1042 = vlaneseq
        %v1043 = vshrl.u32 %v1042, 7
        %v1044 = vsub.s32 1, %v1043
        %v1045 = vrot.slane %v1035, %v1044
        %v1046 = vmul.f32 %v1020, %v1041
        %v1047 = vmul.f32 %v1021, %v1045
        %v1048 = vmul.f32 %v1022, %v1041
        %v1049 = vmul.f32 %v1023, %v1045
        %v1050 = vmul.f32 %v1024, %v1041
        %v1051 = vmul.f32 %v1025, %v1045
        %v1052 = vmul.f32 %v1026, %v1041
        %v1053 = vmul.f32 %v1027, %v1045
        %v1054 = vadd.f32 %v691, %v1046
        %v1055 = vadd.f32 %v692, %v1047
        %v1056 = vadd.f32 %v693, %v1048
        %v1057 = vadd.f32 %v694, %v1049
        %v1058 = vadd.f32 %v695, %v1050
        %v1059 = vadd.f32 %v696, %v1051
        %v1060 = vadd.f32 %v697, %v1052
        %v1061 = vadd.f32 %v698, %v1053
        %v1062 = vadd.f32 %v1054, %v843
        %v1063 = vadd.f32 %v1055, %v844
        %v1064 = vadd.f32 %v1056, %v845
        %v1065 = vadd.f32 %v1057, %v846
        %v1066 = vadd.f32 %v1058, %v847
        %v1067 = vadd.f32 %v1059, %v848
        %v1068 = vadd.f32 %v1060, %v849
        %v1069 = vadd.f32 %v1061, %v850
        %1070 = vset.pattern.permute.xlu0 10
        %1071 = vperm.xlu0 %1070, %v252
        %v1072 = vpop.permute.xlu0 %1071
        %1074 = vset.pattern.permute.xlu0 10
        %1075 = vperm.xlu0 %1074, %v253
        %v1076 = vpop.permute.xlu0 %1075
        %1078 = vset.pattern.permute.xlu0 10
        %1079 = vperm.xlu0 %1078, %v254
        %v1080 = vpop.permute.xlu0 %1079
        %1082 = vset.pattern.permute.xlu0 10
        %1083 = vperm.xlu0 %1082, %v255
        %v1084 = vpop.permute.xlu0 %1083
        %v1086 = vadd.f32 %v1062, %v1072
        %v1087 = vadd.f32 %v1063, %v1072
        %v1088 = vadd.f32 %v1064, %v1076
        %v1089 = vadd.f32 %v1065, %v1076
        %v1090 = vadd.f32 %v1066, %v1080
        %v1091 = vadd.f32 %v1067, %v1080
        %v1092 = vadd.f32 %v1068, %v1084
        %v1093 = vadd.f32 %v1069, %v1084
        %v1094 = vmul.f32 %v1086, 0.5
        %v1095 = vmul.f32 %v1087, 0.5
        %v1096 = vmul.f32 %v1088, 0.5
        %v1097 = vmul.f32 %v1089, 0.5
        %v1098 = vmul.f32 %v1090, 0.5
        %v1099 = vmul.f32 %v1091, 0.5
        %v1100 = vmul.f32 %v1092, 0.5
        %v1101 = vmul.f32 %v1093, 0.5
        %v1102 = vmul.f32 %v1086, %v1086
        %v1103 = vmul.f32 %v1087, %v1087
        %v1104 = vmul.f32 %v1088, %v1088
        %v1105 = vmul.f32 %v1089, %v1089
        %v1106 = vmul.f32 %v1090, %v1090
        %v1107 = vmul.f32 %v1091, %v1091
        %v1108 = vmul.f32 %v1092, %v1092
        %v1109 = vmul.f32 %v1093, %v1093
        %v1110 = vmul.f32 %v1102, %v1086
        %v1111 = vmul.f32 %v1103, %v1087
        %v1112 = vmul.f32 %v1104, %v1088
        %v1113 = vmul.f32 %v1105, %v1089
        %v1114 = vmul.f32 %v1106, %v1090
        %v1115 = vmul.f32 %v1107, %v1091
        %v1116 = vmul.f32 %v1108, %v1092
        %v1117 = vmul.f32 %v1109, %v1093
        %v1118 = vmul.f32 %v1110, 0.044715
        %v1119 = vmul.f32 %v1111, 0.044715
        %v1120 = vmul.f32 %v1112, 0.044715
        %v1121 = vmul.f32 %v1113, 0.044715
        %v1122 = vmul.f32 %v1114, 0.044715
        %v1123 = vmul.f32 %v1115, 0.044715
        %v1124 = vmul.f32 %v1116, 0.044715
        %v1125 = vmul.f32 %v1117, 0.044715
        %v1126 = vadd.f32 %v1086, %v1118
        %v1127 = vadd.f32 %v1087, %v1119
        %v1128 = vadd.f32 %v1088, %v1120
        %v1129 = vadd.f32 %v1089, %v1121
        %v1130 = vadd.f32 %v1090, %v1122
        %v1131 = vadd.f32 %v1091, %v1123
        %v1132 = vadd.f32 %v1092, %v1124
        %v1133 = vadd.f32 %v1093, %v1125
        %v1134 = vmul.f32 %v1126, 0.7978846
        %v1135 = vmul.f32 %v1127, 0.7978846
        %v1136 = vmul.f32 %v1128, 0.7978846
        %v1137 = vmul.f32 %v1129, 0.7978846
        %v1138 = vmul.f32 %v1130, 0.7978846
        %v1139 = vmul.f32 %v1131, 0.7978846
        %v1140 = vmul.f32 %v1132, 0.7978846
        %v1141 = vmul.f32 %v1133, 0.7978846
        %v1142 = vtanh.pop %v1134
        %v1143 = vtanh.pop %v1135
        %v1144 = vtanh.pop %v1136
        %v1145 = vtanh.pop %v1137
        %v1146 = vtanh.pop %v1138
        %v1147 = vtanh.pop %v1139
        %v1148 = vtanh.pop %v1140
        %v1149 = vtanh.pop %v1141
        %v1150 = vadd.f32 %v1142, 1.0
        %v1151 = vadd.f32 %v1143, 1.0
        %v1152 = vadd.f32 %v1144, 1.0
        %v1153 = vadd.f32 %v1145, 1.0
        %v1154 = vadd.f32 %v1146, 1.0
        %v1155 = vadd.f32 %v1147, 1.0
        %v1156 = vadd.f32 %v1148, 1.0
        %v1157 = vadd.f32 %v1149, 1.0
        %v1158 = vmul.f32 %v1094, %v1150
        %v1159 = vmul.f32 %v1095, %v1151
        %v1160 = vmul.f32 %v1096, %v1152
        %v1161 = vmul.f32 %v1097, %v1153
        %v1162 = vmul.f32 %v1098, %v1154
        %v1163 = vmul.f32 %v1099, %v1155
        %v1164 = vmul.f32 %v1100, %v1156
        %v1165 = vmul.f32 %v1101, %v1157
        %v1166 = vld [vmem:[%s2] sm:$0xff]
        %v1167 = vld [vmem:[%s4] sm:$0xff]
        %1169 = vset.pattern.permute.xlu0 0
        %1170 = vperm.xlu0 %1169, %v1167
        %v1171 = vpop.permute.xlu0 %1170
        %vm1173 = vcmask 261120
        %v1175 = vsel %vm1173, %v1166, 0
        %1177 = vmatprep.subr.mxu0 %v1159
        %1178 = vmatpush1.msra.mxu0 %v1158
        %1179 = vmatprep.subr.mxu0 %v1161
        %1180 = vmatpush1.msra.mxu0 %v1160
        %1181 = vmatprep.subr.mxu0 %v1163
        %1182 = vmatpush1.msra.mxu0 %v1162
        %1183 = vmatprep.subr.mxu0 %v1165
        %1184 = vmatpush1.msra.mxu0 %v1164
        %1185 = vmatprep.subr.mxu0 0.0
        %1186 = vmatpush1.msra.mxu0 0.0
        %1187 = vmatprep.subr.mxu0 0.0
        %1188 = vmatpush1.msra.mxu0 0.0
        %1189 = vmatprep.subr.mxu0 0.0
        %1190 = vmatpush1.msra.mxu0 0.0
        %1191 = vmatprep.subr.mxu0 0.0
        %1192 = vmatpush1.msra.mxu0 0.0
        %1193 = vmatprep.subr.mxu0 0.0
        %1194 = vmatpush1.msra.mxu0 0.0
        %1195 = vmatprep.subr.mxu0 0.0
        %1196 = vmatpush1.msra.mxu0 0.0
        %1197 = vmatprep.subr.mxu0 0.0
        %1198 = vmatpush1.msra.mxu0 0.0
        %1199 = vmatprep.subr.mxu0 0.0
        %1200 = vmatpush1.msra.mxu0 0.0
        %1201 = vmatprep.subr.mxu0 0.0
        %1202 = vmatpush1.msra.mxu0 0.0
        %1203 = vmatprep.subr.mxu0 0.0
        %1204 = vmatpush1.msra.mxu0 0.0
        %1205 = vmatprep.subr.mxu0 0.0
        %1206 = vmatpush1.msra.mxu0 0.0
        %1207 = vmatprep.subr.mxu0 0.0
        %1208 = vmatpush1.msra.mxu0 0.0
        %1209 = vmatprep.subr.mxu0 0.0
        %1210 = vmatpush1.msra.mxu0 0.0
        %1211 = vmatprep.subr.mxu0 0.0
        %1212 = vmatpush1.msra.mxu0 0.0
        %1213 = vmatprep.subr.mxu0 0.0
        %1214 = vmatpush1.msra.mxu0 0.0
        %1215 = vmatprep.subr.mxu0 0.0
        %1216 = vmatpush1.msra.mxu0 0.0
        %1217 = vmatprep.subr.mxu0 0.0
        %1218 = vmatpush1.msra.mxu0 0.0
        %1219 = vmatprep.subr.mxu0 0.0
        %1220 = vmatpush1.msra.mxu0 0.0
        %1221 = vmatprep.subr.mxu0 0.0
        %1222 = vmatpush1.msra.mxu0 0.0
        %1223 = vmatprep.subr.mxu0 0.0
        %1224 = vmatpush1.msra.mxu0 0.0
        %1225 = vmatprep.subr.mxu0 0.0
        %1226 = vmatpush1.msra.mxu0 0.0
        %1227 = vmatprep.subr.mxu0 0.0
        %1228 = vmatpush1.msra.mxu0 0.0
        %1229 = vmatprep.subr.mxu0 0.0
        %1230 = vmatpush1.msra.mxu0 0.0
        %1231 = vmatprep.subr.mxu0 0.0
        %1232 = vmatpush1.msra.mxu0 0.0
        %1233 = vmatprep.subr.mxu0 0.0
        %1234 = vmatpush1.msra.mxu0 0.0
        %1235 = vmatprep.subr.mxu0 0.0
        %1236 = vmatpush1.msra.mxu0 0.0
        %1237 = vmatprep.subr.mxu0 0.0
        %1238 = vmatpush1.msra.mxu0 0.0
        %1239 = vmatprep.subr.mxu0 0.0
        %1240 = vmatpush1.msra.mxu0 0.0
        %1241 = vmatprep.mubr.f32.mxu0 0.0
        %1242 = vmatmul.mubr.f32.gmra.mrb[0].mxu0 %v1175
        %v1243 = vpop.f32.mrb[0].mxu0
        %v1244 = vadd.f32 %v1171, %v1243
        %v1245 = vpop.f32.mrb[0].mxu0
        %v1246 = vadd.f32 %v1171, %v1245
        %1247 = vdwg.mxu0
        %v1248 = vadd.f32 %v1244, %v250
        %v1249 = vadd.f32 %v1246, %v251
        %v1250 = vmul.f32 %v1248, 0.5
        %v1251 = vmul.f32 %v1249, 0.5
        %v1252 = vmul.f32 %v1248, %v1248
        %v1253 = vmul.f32 %v1249, %v1249
        %v1254 = vmul.f32 %v1252, %v1248
        %v1255 = vmul.f32 %v1253, %v1249
        %v1256 = vmul.f32 %v1254, 0.044715
        %v1257 = vmul.f32 %v1255, 0.044715
        %v1258 = vadd.f32 %v1248, %v1256
        %v1259 = vadd.f32 %v1249, %v1257
        %v1260 = vmul.f32 %v1258, 0.7978846
        %v1261 = vmul.f32 %v1259, 0.7978846
        %v1262 = vtanh.pop %v1260
        %v1263 = vtanh.pop %v1261
        %v1264 = vadd.f32 %v1262, 1.0
        %v1265 = vadd.f32 %v1263, 1.0
        %v1266 = vmul.f32 %v1250, %v1264
        %v1267 = vmul.f32 %v1251, %v1265
        %1268 = vst [vmem:[%s244] sm:$0xff] %v1266
        %1269 = vst [vmem:[%s244 + $0x8] sm:$0xff] %v1267
        %s1270 = sand.u32 %s159, 1
        %s1271 = scalar_lea.sflag [#allocation3], %s1270
        %s1272 = sand.u32 %s159, 1
        %s1273 = smul.addr %s1272, 16
        %s1274 = scalar_lea.vmem [#allocation2], %s1273
        // Predicated region
        $region45: #{tpu_custom_call.1} parent=43 // pred_check
          %p1275 = pneg %p169
        $region46: #{tpu_custom_call.1} parent=43 // pred_check_branch
          %1277 = sbr.rel (%p1275) target = $region48
        $region47: #{tpu_custom_call.1} parent=43 // pred_region
          %s1279 = ssub.s32 256, 256
          %1280 = vsyncadd %s1271, %s1279
          %s1281 = smul.addr %s20, 2
          %s1282 = smul.addr %s1281, 128
          %s1283 = scalar_lea.hbm %s6, %s1282
          %s1285 = sshll.u32 %s1274, 4
          %s1286 = int_to_ptr.vmem [resolvable:$true] %s1285
          %1288 = dma.vmem_to_hbm [thread:$0]  %s1286, 256, %s1283, %s1271
        $region48: #{tpu_custom_call.1} parent=43 // pred_fallthru
          _
      $region44: #{tpu_custom_call.1} parent=5 // pred_fallthru
        _
      %p1289 = scmp.le.s32.totalorder 2, %s15
      // Predicated region
      $region49: #{tpu_custom_call.1} parent=5 // pred_check
        %p1290 = pneg %p1289
      $region50: #{tpu_custom_call.1} parent=5 // pred_check_branch
        %1292 = sbr.rel (%p1290) target = $region52
      $region51: #{tpu_custom_call.1} parent=5 // pred_region
        %s1293 = ssub.s32 %s15, 2
        // Predicated region
        $region53: #{tpu_custom_call.1} parent=51 // pred_check
          %p1294 = pneg %p175
        $region54: #{tpu_custom_call.1} parent=51 // pred_check_branch
          %1296 = sbr.rel (%p1294) target = $region56
        $region55: #{tpu_custom_call.1} parent=51 // pred_region
          %s1297 = sand.u32 %s160, 1
          %s1298 = scalar_lea.sflag [#allocation3], %s1297
          %s1299 = sand.u32 %s160, 1
          %s1300 = smul.addr %s1299, 16
          %s1301 = scalar_lea.vmem [#allocation2], %s1300
          %1302 = dma.done %s1298, 256
        $region56: #{tpu_custom_call.1} parent=51 // pred_fallthru
          _
      $region52: #{tpu_custom_call.1} parent=5 // pred_fallthru
        _
    $region6: #{tpu_custom_call.1} parent=1 // loop_footer
      %s19 = sadd.s32 1, %s15
    $region7: #{tpu_custom_call.1} parent=1 // loop_footer_branch
      %14 = sbr.rel target = $region3
    $region8: #{tpu_custom_call.1} parent=1 // loop_exit
      _
    %1303 = vsyncpa [#allocation3], 1
    %s1304 = scalar_lea.sflag [#allocation3], 1
    %1305 = vsyncpa %s1304, 1

</llo_original>
